<compile_context>
chip_gen: v7x
topology: tpu7x:2x2x1
jax: 0.10.0
libtpu: 0.0.40
codegen_flags: <defaults>
</compile_context>

<pallas_src>
import functools
import math

import jax
import jax.numpy as jnp
from jax.experimental import pallas as pl
from jax.experimental.pallas import tpu as pltpu

EPS = 1e-5
# Fresh eval-mode BatchNorm stats: gamma=1, beta=0, running_mean=0, running_var=1.
BN_SCALE = 1.0 / math.sqrt(1.0 + EPS)


def _round_up(x, m):
    return (x + m - 1) // m * m


def _best_div(q, max_d):
    for d in range(min(q, max_d), 0, -1):
        if q % d == 0:
            return d
    return 1


# ----------------------------------------------------------------------------
# Pallas kernel: single-K-block bf16 matmul, f32 accumulate, fused bias + act
# ----------------------------------------------------------------------------
def _mm_kernel(act, x_ref, w_ref, b_ref, o_ref):
    # Full K lives in one block => no cross-step accumulator, no zero-init,
    # no read-modify-write on the output ref.
    y = jnp.dot(x_ref[...], w_ref[...], preferred_element_type=jnp.float32)
    y = y + b_ref[...]                       # bias (BN scale already folded in)
    if act == "hardswish":                   # x * relu6(x + 3) / 6
        y = y * jnp.clip(y + 3.0, 0.0, 6.0) * (1.0 / 6.0)
    # act == "identity": no-op
    o_ref[...] = y.astype(o_ref.dtype)


def _choose_tiles(M, K, Np):
    """Pick (Mp, tm, tn) for an (M, K) @ (K, Np) matmul with full-K blocks."""
    tn = 128 * _best_div(Np // 128, 4)       # lane-dense output blocks
    Mp = _round_up(M, 16)                    # bf16 sublane packing

    # VMEM guardrail: double-buffered x (bf16) + w (bf16) + bias (f32) + out
    # (bf16) tiles must stay comfortably under v5e's 16 MiB scoped default (and
    # trivially under v7x's 64 MiB physical VMEM), so no vmem_limit override.
    def footprint(tm):
        return 2 * (2 * tm * K + 2 * K * tn + 4 * tn + 2 * tm * tn)

    cap = 2048                               # big tm amortizes ~0.35us/step overhead
    while cap > 128 and footprint(cap) > (10 << 20):
        cap //= 2

    if Mp <= cap:
        tm = Mp
    else:
        tm = cap
        Mp = _round_up(Mp, tm)

    # v7x has 2 TensorCores sharing the grid: keep >=2 blocks along a
    # "parallel" axis whenever the problem allows it.
    if Mp // tm == 1 and Np // tn == 1:
        if tm % 32 == 0:
            tm //= 2
        elif (Np // 128) >= 2:
            tn = 128 * _best_div(Np // 128, (Np // 128) // 2)
    return Mp, tm, tn


def matmul_bias_act(x_bf16, w_pad, b_pad, n_out, act):
    """act(x @ w + b); x: (M, K) bf16 (K unpadded), w_pad: (K, Np) bf16,
    b_pad: (1, Np) f32.  Returns (M, n_out) bf16."""
    M, K = x_bf16.shape
    Kw, Np = w_pad.shape
    assert K == Kw
    Mp, tm, tn = _choose_tiles(M, K, Np)
    if Mp != M:                              # rows only; never pad K in HBM
        x_bf16 = jnp.pad(x_bf16, ((0, Mp - M), (0, 0)))

    out = pl.pallas_call(
        functools.partial(_mm_kernel, act),
        out_shape=jax.ShapeDtypeStruct((Mp, Np), jnp.bfloat16),
        grid_spec=pltpu.PrefetchScalarGridSpec(
            num_scalar_prefetch=0,
            grid=(Mp // tm, Np // tn),
            in_specs=[
                # K carried as the full array dim => no (8,128) padding required
                # and no 8x inflation of the dominant activation read stream.
                pl.BlockSpec((tm, K), lambda i, j: (i, 0)),   # activations (bf16)
                pl.BlockSpec((K, tn), lambda i, j: (0, j)),   # weights (bf16)
                pl.BlockSpec((1, tn), lambda i, j: (0, j)),   # bias (f32)
            ],
            out_specs=pl.BlockSpec((tm, tn), lambda i, j: (i, j)),
        ),
        compiler_params=pltpu.CompilerParams(
            dimension_semantics=("parallel", "parallel"),
        ),
    )(x_bf16, w_pad, b_pad)
    return out[:M, :n_out]


# ----------------------------------------------------------------------------
# Focus module glue
# ----------------------------------------------------------------------------
def space_to_depth(x_nhwc):
    """Matches torch.cat([x[...,::2,::2], x[...,1::2,::2], x[...,::2,1::2],
    x[...,1::2,1::2]], dim=1) in NHWC layout, via one reshape/transpose."""
    n, h, w, c = x_nhwc.shape
    x = x_nhwc.reshape(n, h // 2, 2, w // 2, 2, c)           # (n,h2,hp,w2,wp,c)
    x = jnp.transpose(x, (0, 1, 3, 4, 2, 5))                 # (n,h2,w2,wp,hp,c)
    return x.reshape(n, h // 2, w // 2, 4 * c)               # ch = (2*wp+hp)*c + ci


def _im2col(x, k, s, p):
    # TODO(synk): for k>1 lower to a (kh,kw) reduction grid axis reading shifted
    # NHWC windows inside the kernel instead of materializing im2col (k^2 x
    # activation HBM traffic on a bandwidth-bound op).
    if p > 0:
        x = jnp.pad(x, ((0, 0), (p, p), (p, p), (0, 0)))
    n, h, w, c = x.shape
    ho = (h - k) // s + 1
    wo = (w - k) // s + 1
    cols = [x[:, i:i + s * ho:s, j:j + s * wo:s, :]
            for i in range(k) for j in range(k)]
    patches = jnp.concatenate(cols, axis=-1)                 # (n, ho, wo, k*k*c)
    return patches.reshape(n * ho * wo, k * k * c), (n, ho, wo)


@functools.partial(jax.jit, static_argnames=("c2", "k", "p", "s", "act"))
def _focus_forward(x_nchw, w_pad, b_pad, *, c2, k, p, s, act):
    # Whole forward under one jit so XLA fuses the NCHW->NHWC cast, the
    # space-to-depth transpose, and the output slice/reshape/transpose.
    # TODO(synk): fold space-to-depth into the kernel's input side (strided
    # index maps on the raw NHWC input) and keep the output NHWC/bf16 for the
    # next layer to remove the remaining wrapper HBM passes.
    x = jnp.transpose(x_nchw, (0, 2, 3, 1)).astype(jnp.bfloat16)   # NCHW -> NHWC
    x = space_to_depth(x)                                          # (n, H/2, W/2, 4*c1)
    if k == 1 and s == 1 and p == 0:
        n, ho, wo, c = x.shape
        cols = x.reshape(n * ho * wo, c)                           # no im2col for 1x1
    else:
        cols, (n, ho, wo) = _im2col(x, k, s, p)
    y = matmul_bias_act(cols, w_pad, b_pad, c2, act)               # (M, c2) bf16
    y = y.reshape(n, ho, wo, c2)
    return jnp.transpose(y, (0, 3, 1, 2)).astype(jnp.float32)      # back to NCHW f32


class FocusPallas:
    """Pallas/TPU port of Focus: space-to-depth + Conv2d + BatchNorm2d + Hardswish."""

    def __init__(self, key, c1, c2, k=1, p=0, s=1, act=True):
        self.c1, self.c2, self.k, self.p, self.s = c1, c2, k, p, s
        self.act = "hardswish" if act else "identity"
        cin = 4 * c1
        kw_key, kb_key = jax.random.split(key)
        w = jax.random.normal(kw_key, (c2, cin, k, k), jnp.float32) / math.sqrt(cin * k * k)
        b = jax.random.normal(kb_key, (c2,), jnp.float32) * 0.01
        self.w_oihw = w                       # f32 copies kept for the reference check
        self.b = b
        # Init-time weight prep: OIHW -> (k*k*Cin, Cout), fold eval-mode BN scale
        # in, pad ONLY the output-channel dim to a 128-lane multiple (K stays at
        # its true size), cast to bf16.  Bias stays f32.
        wmat = jnp.transpose(w, (2, 3, 1, 0)).reshape(k * k * cin, c2) * BN_SCALE
        K, N = wmat.shape
        Np = _round_up(N, 128)
        self.w_pad = jnp.pad(wmat, ((0, 0), (0, Np - N))).astype(jnp.bfloat16)
        self.b_pad = jnp.pad(b * BN_SCALE, (0, Np - N)).reshape(1, Np).astype(jnp.float32)

    def __call__(self, x_nchw):
        return _focus_forward(x_nchw, self.w_pad, self.b_pad,
                              c2=self.c2, k=self.k, p=self.p, s=self.s,
                              act=self.act)


def focus_reference(x, w_oihw, b, k, p, s):
    """Pure-JAX f32 reference of the PyTorch Focus forward (eval-mode BN)."""
    xs = jnp.concatenate([x[..., ::2, ::2], x[..., 1::2, ::2],
                          x[..., ::2, 1::2], x[..., 1::2, 1::2]], axis=1)
    y = jax.lax.conv_general_dilated(
        xs, w_oihw, window_strides=(s, s), padding=[(p, p), (p, p)],
        dimension_numbers=("NCHW", "OIHW", "NCHW"))
    y = (y + b[None, :, None, None]) * BN_SCALE
    return y * jnp.clip(y + 3.0, 0.0, 6.0) / 6.0


# ----------------------------------------------------------------------------
if __name__ == "__main__":
    key = jax.random.PRNGKey(0)
    kp, kx = jax.random.split(key)
    # Focus(c1=4, c2=64) with the module's defaults (k=1, p=0, s=1, act=True).
    focus = FocusPallas(kp, c1=4, c2=64)
    x = jax.random.normal(kx, (2, 4, 16, 16), jnp.float32)

    out = focus(x)
    jax.block_until_ready(out)

    assert out.shape == (2, 64, 8, 8)
    assert bool(jnp.all(jnp.isfinite(out)))

    ref = focus_reference(x, focus.w_oihw, focus.b, focus.k, focus.p, focus.s)
    max_err = float(jnp.max(jnp.abs(out - ref)))
    assert max_err < 0.1, f"mismatch vs reference: {max_err}"

    print("KERNEL_OK")
</pallas_src>

<mosaic_0001>
module attributes {stable_mosaic.version = 11 : i64} {
  func.func @_mm_kernel(%arg0: i32, %arg1: i32, %arg2: memref<64x16xbf16, #tpu.memory_space<vmem>>, %arg3: memref<16x128xbf16, #tpu.memory_space<vmem>>, %arg4: memref<1x128xf32, #tpu.memory_space<vmem>>, %arg5: memref<64x128xbf16, #tpu.memory_space<vmem>>) attributes {dimension_semantics = [#tpu.dimension_semantics<parallel>, #tpu.dimension_semantics<parallel>], iteration_bounds = array<i64: 2, 1>, scalar_prefetch = 0 : i64, scratch_operands = 0 : i64, tpu.core_type = #tpu.core_type<tc>, window_params = [{transform_indices = @transform_0, window_bounds = array<i64: 64, 16>}, {transform_indices = @transform_1, window_bounds = array<i64: 16, 128>}, {transform_indices = @transform_2, window_bounds = array<i64: 1, 128>}, {transform_indices = @transform_3, window_bounds = array<i64: 64, 128>}]} {
    %c0 = arith.constant 0 : index
    %c0_0 = arith.constant 0 : index
    %0 = vector.load %arg2[%c0, %c0_0] : memref<64x16xbf16, #tpu.memory_space<vmem>>, vector<64x16xbf16>
    %c0_1 = arith.constant 0 : index
    %c0_2 = arith.constant 0 : index
    %1 = vector.load %arg3[%c0_1, %c0_2] : memref<16x128xbf16, #tpu.memory_space<vmem>>, vector<16x128xbf16>
    %cst = arith.constant dense<0.000000e+00> : vector<64x128xf32>
    %2 = tpu.matmul %0, %1, %cst {dimension_numbers = #tpu.dot_dimension_numbers<[1], [0], [0], [1], [0, 0, 1, 1], [], []>} : vector<64x16xbf16>, vector<16x128xbf16>, vector<64x128xf32> -> vector<64x128xf32>
    %c0_3 = arith.constant 0 : index
    %c0_4 = arith.constant 0 : index
    %3 = vector.load %arg4[%c0_3, %c0_4] : memref<1x128xf32, #tpu.memory_space<vmem>>, vector<1x128xf32>
    %4 = vector.broadcast %3 : vector<1x128xf32> to vector<64x128xf32>
    %5 = arith.addf %2, %4 : vector<64x128xf32>
    %cst_5 = arith.constant 3.000000e+00 : f32
    %6 = vector.broadcast %cst_5 : f32 to vector<64x128xf32>
    %7 = arith.addf %5, %6 : vector<64x128xf32>
    %cst_6 = arith.constant 0.000000e+00 : f32
    %cst_7 = arith.constant 6.000000e+00 : f32
    %8 = vector.broadcast %cst_6 : f32 to vector<64x128xf32>
    %9 = arith.maximumf %8, %7 : vector<64x128xf32>
    %10 = vector.broadcast %cst_7 : f32 to vector<64x128xf32>
    %11 = arith.minimumf %10, %9 : vector<64x128xf32>
    %12 = arith.mulf %5, %11 : vector<64x128xf32>
    %cst_8 = arith.constant 0.166666672 : f32
    %13 = vector.broadcast %cst_8 : f32 to vector<64x128xf32>
    %14 = arith.mulf %12, %13 : vector<64x128xf32>
    %15 = arith.truncf %14 : vector<64x128xf32> to vector<64x128xbf16>
    %c0_9 = arith.constant 0 : index
    %c0_10 = arith.constant 0 : index
    %16 = vector.load %arg5[%c0_9, %c0_10] : memref<64x128xbf16, #tpu.memory_space<vmem>>, vector<64x128xbf16>
    tpu.vector_store %arg5[%c0_9, %c0_10], %15 {strides = array<i32>} : memref<64x128xbf16, #tpu.memory_space<vmem>>, vector<64x128xbf16>,
    return
  }
  func.func @transform_0(%arg0: i32, %arg1: i32) -> (i32, i32) {
    %c0_i32 = arith.constant 0 : i32
    %c0_i32_0 = arith.constant 0 : i32
    return %arg0, %c0_i32 : i32, i32
  }
  func.func @transform_1(%arg0: i32, %arg1: i32) -> (i32, i32) {
    %c0_i32 = arith.constant 0 : i32
    %c0_i32_0 = arith.constant 0 : i32
    return %c0_i32, %arg1 : i32, i32
  }
  func.func @transform_2(%arg0: i32, %arg1: i32) -> (i32, i32) {
    %c0_i32 = arith.constant 0 : i32
    %c0_i32_0 = arith.constant 0 : i32
    return %c0_i32, %arg1 : i32, i32
  }
  func.func @transform_3(%arg0: i32, %arg1: i32) -> (i32, i32) {
    %c0_i32 = arith.constant 0 : i32
    return %arg0, %arg1 : i32, i32
  }
}

</mosaic_0001>

<llo_original>
// kernel: _focus_forward.1
$region0: #{_focus_forward.1}
  #allocation0 [shape = 'u32[]', space=smem, size = 0x4, offset = 0x4, fixed_abs, tag = 'smem constant byte address 0x4 - core index']
  #allocation1 [shape = 'u32[144,128]{1,0:T(1,128)}', space=vmem, size = 0x12000, scoped, tag = 'internal scratch']
  %s0 = inlined_call_operand.vmem [shape: bf16[128,16], index: 0, kind: input, shape index: {}]
  %s1 = inlined_call_operand.vmem [shape: bf16[16,128], index: 1, kind: input, shape index: {}]
  %s2 = inlined_call_operand.vmem [shape: f32[1,128], index: 2, kind: input, shape index: {}]
  %s3 = inlined_call_operand.vmem [shape: bf16[128,128], index: 3, kind: output, shape index: {}]
  %s4 = sld [smem:[#allocation0]]
  $region45: #{_focus_forward.1} parent=0
    _
  %s6 = ssub.s32 1, %s4
  %s7 = scalar_select 0, %s6, %s4
  loop: start=0, step=1, limit=4
  $region2: #{_focus_forward.1} parent=0 // loop_pre_header
    _
  $region3: #{_focus_forward.1} parent=0 // loop_header
    %s9 = sphi 0, %s13
    %p10 = scmp.ge.s32.totalorder %s9, 4
    %s16 = sphi 0, %s28
    %s17 = sphi 0, %s24
    %s18 = sphi 0, %s16
    %s19 = sphi 0, %s17
    %s20 = sphi 0, %s18
    %s21 = sphi 0, %s19
    %s31 = sphi 0, %s33
    %s34 = sphi 0, %s31
    %s35 = sphi 0, %s34
    %s51 = sphi 0, %s35
    %s57 = sphi 0, %s59
    %s60 = sphi 0, %s57
    %s61 = sphi 0, %s60
    %s77 = sphi 0, %s61
    %s83 = sphi 0, %s85
    %s86 = sphi 0, %s83
    %s87 = sphi 0, %s86
    %s103 = sphi 0, %s87
    %s111 = sphi 0, %s113
    %s114 = sphi 0, %s111
    %s115 = sphi 0, %s114
    %s131 = sphi 0, %s115
  $region4: #{_focus_forward.1} parent=0 // loop_header_branch
    %12 = sbr.rel (%p10) target = $region8
  $region5: #{_focus_forward.1} parent=0 // loop_body
    %s14 = ssub.s32 %s9, 1
    %s15 = ssub.s32 %s9, 2
    %s22 = sadd.s32 1, %s17
    %p23 = scmp.ge.s32.totalorder %s22, 1
    %s24 = scalar_select %p23, 0, %s22
    %s25 = sadd.s32 1, %s16
    %s26 = scalar_select %p23, %s25, %s16
    %p27 = scmp.ge.s32.totalorder %s26, 2
    %s28 = scalar_select %p27, 0, %s26
    %s29 = ssub.s32 %s16, %s28
    %p30 = scmp.eq.s32.totalorder %s29, 0
    %s32 = sadd.s32 %s31, 1
    %s33 = scalar_select %p30, %s31, %s32
    %p36 = pneg %p30
    %p37 = scmp.eq.s32.totalorder %s9, 1
    %p38 = por %p36, %p37
    %p39 = scmp.ne.s32.totalorder %s31, %s34
    %p40 = scmp.eq.s32.totalorder %s9, 0
    %p41 = por %p39, %p40
    %p42 = scmp.ne.s32.totalorder %s31, %s34
    %p43 = scmp.eq.s32.totalorder %s14, 1
    %p44 = por %p42, %p43
    %p45 = scmp.ne.s32.totalorder %s34, %s35
    %p46 = scmp.eq.s32.totalorder %s14, 0
    %p47 = por %p45, %p46
    %p48 = scmp.ne.s32.totalorder %s34, %s35
    %p49 = scmp.eq.s32.totalorder %s15, 1
    %p50 = por %p48, %p49
    %p52 = scmp.ne.s32.totalorder %s35, %s51
    %p53 = scmp.eq.s32.totalorder %s15, 0
    %p54 = por %p52, %p53
    %s55 = ssub.s32 %s17, %s24
    %p56 = scmp.eq.s32.totalorder %s55, 0
    %s58 = sadd.s32 %s57, 1
    %s59 = scalar_select %p56, %s57, %s58
    %p62 = pneg %p56
    %p63 = scmp.eq.s32.totalorder %s9, 1
    %p64 = por %p62, %p63
    %p65 = scmp.ne.s32.totalorder %s57, %s60
    %p66 = scmp.eq.s32.totalorder %s9, 0
    %p67 = por %p65, %p66
    %p68 = scmp.ne.s32.totalorder %s57, %s60
    %p69 = scmp.eq.s32.totalorder %s14, 1
    %p70 = por %p68, %p69
    %p71 = scmp.ne.s32.totalorder %s60, %s61
    %p72 = scmp.eq.s32.totalorder %s14, 0
    %p73 = por %p71, %p72
    %p74 = scmp.ne.s32.totalorder %s60, %s61
    %p75 = scmp.eq.s32.totalorder %s15, 1
    %p76 = por %p74, %p75
    %p78 = scmp.ne.s32.totalorder %s61, %s77
    %p79 = scmp.eq.s32.totalorder %s15, 0
    %p80 = por %p78, %p79
    %s81 = ssub.s32 %s17, %s24
    %p82 = scmp.eq.s32.totalorder %s81, 0
    %s84 = sadd.s32 %s83, 1
    %s85 = scalar_select %p82, %s83, %s84
    %p88 = pneg %p82
    %p89 = scmp.eq.s32.totalorder %s9, 1
    %p90 = por %p88, %p89
    %p91 = scmp.ne.s32.totalorder %s83, %s86
    %p92 = scmp.eq.s32.totalorder %s9, 0
    %p93 = por %p91, %p92
    %p94 = scmp.ne.s32.totalorder %s83, %s86
    %p95 = scmp.eq.s32.totalorder %s14, 1
    %p96 = por %p94, %p95
    %p97 = scmp.ne.s32.totalorder %s86, %s87
    %p98 = scmp.eq.s32.totalorder %s14, 0
    %p99 = por %p97, %p98
    %p100 = scmp.ne.s32.totalorder %s86, %s87
    %p101 = scmp.eq.s32.totalorder %s15, 1
    %p102 = por %p100, %p101
    %p104 = scmp.ne.s32.totalorder %s87, %s103
    %p105 = scmp.eq.s32.totalorder %s15, 0
    %p106 = por %p104, %p105
    %s107 = ssub.s32 %s16, %s28
    %s108 = ssub.s32 %s17, %s24
    %s109 = sor.u32 %s107, %s108
    %p110 = scmp.eq.s32.totalorder %s109, 0
    %s112 = sadd.s32 %s111, 1
    %s113 = scalar_select %p110, %s111, %s112
    %p116 = pneg %p110
    %p117 = scmp.eq.s32.totalorder %s9, 1
    %p118 = por %p116, %p117
    %p119 = scmp.ne.s32.totalorder %s111, %s114
    %p120 = scmp.eq.s32.totalorder %s9, 0
    %p121 = por %p119, %p120
    %p122 = scmp.ne.s32.totalorder %s111, %s114
    %p123 = scmp.eq.s32.totalorder %s14, 1
    %p124 = por %p122, %p123
    %p125 = scmp.ne.s32.totalorder %s114, %s115
    %p126 = scmp.eq.s32.totalorder %s14, 0
    %p127 = por %p125, %p126
    %p128 = scmp.ne.s32.totalorder %s114, %s115
    %p129 = scmp.eq.s32.totalorder %s15, 1
    %p130 = por %p128, %p129
    %p132 = scmp.ne.s32.totalorder %s115, %s131
    %p133 = scmp.eq.s32.totalorder %s15, 0
    %p134 = por %p132, %p133
    %p135 = scmp.le.s32.totalorder 1, %s9
    %p136 = scmp.lt.s32.totalorder %s9, 3
    %p137 = pnand %p135, %p136
    %p138 = pneg %p137
    // Predicated region
    $region9: #{_focus_forward.1} parent=5 // pred_check
      _
    $region10: #{_focus_forward.1} parent=5 // pred_check_branch
      %140 = sbr.rel (%p137) target = $region12
    $region11: #{_focus_forward.1} parent=5 // pred_region
      %s141 = ssub.s32 %s9, 1
      // Predicated region
      $region13: #{_focus_forward.1} parent=11 // pred_check
        %p142 = pneg %p73
      $region14: #{_focus_forward.1} parent=11 // pred_check_branch
        %144 = sbr.rel (%p142) target = $region16
      $region15: #{_focus_forward.1} parent=11 // pred_region
        %p145 = scmp.lt.s32.totalorder %s19, 0
        %s146 = scalar_select %p145, %s19, 0
        %s147 = smul.addr %s146, 4
        %s148 = scalar_lea.vmem %s1, %s147
      $region16: #{_focus_forward.1} parent=11 // pred_fallthru
        _
      // Predicated region
      $region17: #{_focus_forward.1} parent=11 // pred_check
        %p149 = pneg %p99
      $region18: #{_focus_forward.1} parent=11 // pred_check_branch
        %151 = sbr.rel (%p149) target = $region20
      $region19: #{_focus_forward.1} parent=11 // pred_region
        %p152 = scmp.lt.s32.totalorder %s19, 0
        %s153 = scalar_select %p152, %s19, 0
        %s154 = scalar_lea.vmem %s2, %s153
      $region20: #{_focus_forward.1} parent=11 // pred_fallthru
        _
    $region12: #{_focus_forward.1} parent=5 // pred_fallthru
      _
    %p155 = scmp.lt.s32.totalorder %s9, 2
    // Predicated region
    $region21: #{_focus_forward.1} parent=5 // pred_check
      %p156 = pneg %p155
    $region22: #{_focus_forward.1} parent=5 // pred_check_branch
      %158 = sbr.rel (%p156) target = $region24
    $region23: #{_focus_forward.1} parent=5 // pred_region
      // Predicated region
      $region25: #{_focus_forward.1} parent=23 // pred_check
        %p159 = pneg %p41
      $region26: #{_focus_forward.1} parent=23 // pred_check_branch
        %161 = sbr.rel (%p159) target = $region28
      $region27: #{_focus_forward.1} parent=23 // pred_region
        %s162 = smul.u32 8, %s16
        %p163 = scmp.lt.s32.totalorder %s162, 15
        %s164 = scalar_select %p163, %s162, 15
        %s165 = smul.addr %s164, 4
        %s166 = scalar_lea.vmem %s0, %s165
        %s167 = smul.u32 8, %s16
      $region28: #{_focus_forward.1} parent=23 // pred_fallthru
        _
    $region24: #{_focus_forward.1} parent=5 // pred_fallthru
      _
    %p168 = scmp.le.s32.totalorder 1, %s9
    %p169 = scmp.lt.s32.totalorder %s9, 3
    %p170 = pnand %p168, %p169
    %p171 = pneg %p170
    // Predicated region
    $region29: #{_focus_forward.1} parent=5 // pred_check
      _
    $region30: #{_focus_forward.1} parent=5 // pred_check_branch
      %173 = sbr.rel (%p170) target = $region32
    $region31: #{_focus_forward.1} parent=5 // pred_region
      %s174 = ssub.s32 %s9, 1
      %s175 = smul.u32 8, %s18
      %p176 = scmp.lt.s32.totalorder %s175, 15
      %s177 = scalar_select %p176, %s175, 15
      %s178 = smul.addr %s177, 4
      %s179 = scalar_lea.vmem %s0, %s178
      %p180 = pneg %p47
      %p181 = pneg %p44
      %p182 = scmp.lt.s32.totalorder %s19, 0
      %s183 = scalar_select %p182, %s19, 0
      %s184 = smul.addr %s183, 4
      %s185 = scalar_lea.vmem %s1, %s184
      %p186 = pneg %p73
      %p187 = pneg %p70
      %p188 = scmp.lt.s32.totalorder %s19, 0
      %s189 = scalar_select %p188, %s19, 0
      %s190 = scalar_lea.vmem %s2, %s189
      %p191 = pneg %p99
      %p192 = pneg %p96
      %p193 = pneg %p127
      %p194 = pneg %p124
      %s195 = smul.u32 8, %s18
      %p196 = scmp.lt.s32.totalorder %s195, 15
      %s197 = scalar_select %p196, %s195, 15
      %p198 = scmp.lt.s32.totalorder %s19, 0
      %s199 = scalar_select %p198, %s19, 0
      %s200 = sadd.s32 %s199, %s197
      %s201 = smul.addr %s200, 4
      %s202 = scalar_lea.vmem %s3, %s201
      %s203 = smul.u32 8, %s18
      %p204 = scmp.lt.s32.totalorder %s203, 15
      %s205 = scalar_select %p204, %s203, 15
      %s206 = smul.addr %s205, 4
      %s207 = scalar_lea.vmem %s0, %s206
      %s208 = smul.u32 8, %s18
      %p209 = scmp.lt.s32.totalorder %s19, 0
      %s210 = scalar_select %p209, %s19, 0
      %s211 = smul.addr %s210, 4
      %s212 = scalar_lea.vmem %s1, %s211
      %p213 = scmp.lt.s32.totalorder %s19, 0
      %s214 = scalar_select %p213, %s19, 0
      %s215 = scalar_lea.vmem %s2, %s214
      %s216 = smul.u32 8, %s18
      %p217 = scmp.lt.s32.totalorder %s216, 15
      %s218 = scalar_select %p217, %s216, 15
      %p219 = scmp.lt.s32.totalorder %s19, 0
      %s220 = scalar_select %p219, %s19, 0
      %s221 = sadd.s32 %s220, %s218
      %s222 = smul.addr %s221, 4
      %s223 = scalar_lea.vmem %s3, %s222
      %s224 = smul.u32 8, %s18
      %v226 = vld [vmem:[%s207] sm:$0xf]
      %v227 = vld [vmem:[%s207 + $0x4] sm:$0xf]
      %v228 = vld [vmem:[%s207 + $0x8] sm:$0xf]
      %v229 = vld [vmem:[%s207 + $0xc] sm:$0xf]
      %v230 = vld [vmem:[%s207 + $0x10] sm:$0xf]
      %v231 = vld [vmem:[%s207 + $0x14] sm:$0xf]
      %v232 = vld [vmem:[%s207 + $0x18] sm:$0xf]
      %v233 = vld [vmem:[%s207 + $0x1c] sm:$0xf]
      %v234 = vld [vmem:[%s212] sm:$0xf]
      %v235 = vld [vmem:[%s212 + $0x4] sm:$0xf]
      %v236 = vld [vmem:[%s215] sm:$0x1]
      %v238 = vlaneseq
      %v239 = vshrl.u32 %v238, 7
      %v240 = vsub.s32 0, %v239
      %v241 = vrot.slane %v236, %v240
      %v251 = vunpack.c.l.b16 %v226
      %v252 = vunpack.c.l.b16 %v227
      %v253 = vunpack.c.l.b16 %v228
      %v254 = vunpack.c.l.b16 %v229
      %v255 = vunpack.c.l.b16 %v230
      %v256 = vunpack.c.l.b16 %v231
      %v257 = vunpack.c.l.b16 %v232
      %v258 = vunpack.c.l.b16 %v233
      %v259 = vpack.c.b16 %v252, %v251
      %v260 = vpack.c.b16 %v254, %v253
      %v261 = vpack.c.b16 %v256, %v255
      %v262 = vpack.c.b16 %v258, %v257
      %v265 = vunpack.c.l.b16 %v234
      %v266 = vunpack.c.l.b16 %v235
      %v267 = vpack.c.b16 %v266, %v265
      %vm269 = vcmask 130048
      %v271 = vsel %vm269, %v259, 0
      %v274 = vsel %vm269, %v260, 0
      %v277 = vsel %vm269, %v261, 0
      %v280 = vsel %vm269, %v262, 0
      %282 = vmatprep.subr.bf16.mxu0 0
      %283 = vmatpush1.bf16.msra.mxu0 %v267
      %284 = vmatprep.subr.bf16.mxu0 0
      %285 = vmatpush1.bf16.msra.mxu0 0
      %286 = vmatprep.subr.bf16.mxu0 0
      %287 = vmatpush1.bf16.msra.mxu0 0
      %288 = vmatprep.subr.bf16.mxu0 0
      %289 = vmatpush1.bf16.msra.mxu0 0
      %290 = vmatprep.subr.bf16.mxu0 0
      %291 = vmatpush1.bf16.msra.mxu0 0
      %292 = vmatprep.subr.bf16.mxu0 0
      %293 = vmatpush1.bf16.msra.mxu0 0
      %294 = vmatprep.subr.bf16.mxu0 0
      %295 = vmatpush1.bf16.msra.mxu0 0
      %296 = vmatprep.subr.bf16.mxu0 0
      %297 = vmatpush1.bf16.msra.mxu0 0
      %298 = vmatprep.subr.bf16.mxu0 0
      %299 = vmatpush1.bf16.msra.mxu0 0
      %300 = vmatprep.subr.bf16.mxu0 0
      %301 = vmatpush1.bf16.msra.mxu0 0
      %302 = vmatprep.subr.bf16.mxu0 0
      %303 = vmatpush1.bf16.msra.mxu0 0
      %304 = vmatprep.subr.bf16.mxu0 0
      %305 = vmatpush1.bf16.msra.mxu0 0
      %306 = vmatprep.subr.bf16.mxu0 0
      %307 = vmatpush1.bf16.msra.mxu0 0
      %308 = vmatprep.subr.bf16.mxu0 0
      %309 = vmatpush1.bf16.msra.mxu0 0
      %310 = vmatprep.subr.bf16.mxu0 0
      %311 = vmatpush1.bf16.msra.mxu0 0
      %312 = vmatprep.subr.bf16.mxu0 0
      %313 = vmatpush1.bf16.msra.mxu0 0
      %314 = vmatprep.mubr.bf16.mxu0 0
      %315 = vmatmul.mubr.bf16.gmra.mrb[0].mxu0 %v271
      %v316 = vpop.f32.mrb[0].mxu0
      %v317 = vadd.f32 %v241, %v316
      %v318 = vpop.f32.mrb[0].mxu0
      %v319 = vpop.f32.mrb[0].mxu0
      %v320 = vadd.f32 %v241, %v319
      %v321 = vpop.f32.mrb[0].mxu0
      %322 = vmatprep.mubr.bf16.mxu0 0
      %323 = vmatmul.mubr.bf16.gmra.mrb[0].mxu0 %v274
      %v324 = vpop.f32.mrb[0].mxu0
      %v325 = vadd.f32 %v241, %v324
      %v326 = vpop.f32.mrb[0].mxu0
      %v327 = vpop.f32.mrb[0].mxu0
      %v328 = vadd.f32 %v241, %v327
      %v329 = vpop.f32.mrb[0].mxu0
      %330 = vmatprep.mubr.bf16.mxu0 0
      %331 = vmatmul.mubr.bf16.gmra.mrb[0].mxu0 %v277
      %v332 = vpop.f32.mrb[0].mxu0
      %v333 = vadd.f32 %v241, %v332
      %v334 = vpop.f32.mrb[0].mxu0
      %v335 = vpop.f32.mrb[0].mxu0
      %v336 = vadd.f32 %v241, %v335
      %v337 = vpop.f32.mrb[0].mxu0
      %338 = vmatprep.mubr.bf16.mxu0 0
      %339 = vmatmul.mubr.bf16.gmra.mrb[0].mxu0 %v280
      %v340 = vpop.f32.mrb[0].mxu0
      %v341 = vadd.f32 %v241, %v340
      %v342 = vpop.f32.mrb[0].mxu0
      %v343 = vpop.f32.mrb[0].mxu0
      %v344 = vadd.f32 %v241, %v343
      %v345 = vpop.f32.mrb[0].mxu0
      %346 = vdwg.mxu0
      %v347 = vadd.f32 %v317, 3.0
      %v348 = vadd.f32 %v320, 3.0
      %v349 = vadd.f32 %v325, 3.0
      %v350 = vadd.f32 %v328, 3.0
      %v351 = vadd.f32 %v333, 3.0
      %v352 = vadd.f32 %v336, 3.0
      %v353 = vadd.f32 %v341, 3.0
      %v354 = vadd.f32 %v344, 3.0
      %v355 = vmax.f32 %v347, 0.0
      %v356 = vmax.f32 %v348, 0.0
      %v357 = vmax.f32 %v349, 0.0
      %v358 = vmax.f32 %v350, 0.0
      %v359 = vmax.f32 %v351, 0.0
      %v360 = vmax.f32 %v352, 0.0
      %v361 = vmax.f32 %v353, 0.0
      %v362 = vmax.f32 %v354, 0.0
      %v363 = vmin.f32 %v355, 6.0
      %v364 = vmin.f32 %v356, 6.0
      %v365 = vmin.f32 %v357, 6.0
      %v366 = vmin.f32 %v358, 6.0
      %v367 = vmin.f32 %v359, 6.0
      %v368 = vmin.f32 %v360, 6.0
      %v369 = vmin.f32 %v361, 6.0
      %v370 = vmin.f32 %v362, 6.0
      %v371 = vmul.f32 %v317, %v363
      %v372 = vmul.f32 %v320, %v364
      %v373 = vmul.f32 %v325, %v365
      %v374 = vmul.f32 %v328, %v366
      %v375 = vmul.f32 %v333, %v367
      %v376 = vmul.f32 %v336, %v368
      %v377 = vmul.f32 %v341, %v369
      %v378 = vmul.f32 %v344, %v370
      %v379 = vmul.f32 %v371, 0.16666667
      %v380 = vmul.f32 %v372, 0.16666667
      %v381 = vmul.f32 %v373, 0.16666667
      %v382 = vmul.f32 %v374, 0.16666667
      %v383 = vmul.f32 %v375, 0.16666667
      %v384 = vmul.f32 %v376, 0.16666667
      %v385 = vmul.f32 %v377, 0.16666667
      %v386 = vmul.f32 %v378, 0.16666667
      %v387 = vpack.c.bf16 %v380, %v379
      %v388 = vpack.c.bf16 %v382, %v381
      %v389 = vpack.c.bf16 %v384, %v383
      %v390 = vpack.c.bf16 %v386, %v385
      %v395 = vunpack.c.l.b16 %v387
      %v396 = vunpack.c.h.b16 %v387
      %v397 = vunpack.c.l.b16 %v388
      %v398 = vunpack.c.h.b16 %v388
      %v399 = vunpack.c.l.b16 %v389
      %v400 = vunpack.c.h.b16 %v389
      %v401 = vunpack.c.l.b16 %v390
      %v402 = vunpack.c.h.b16 %v390
      %v403 = vpack.c.b16 %v395, %v395
      %v404 = vpack.c.b16 %v396, %v396
      %v405 = vpack.c.b16 %v397, %v397
      %v406 = vpack.c.b16 %v398, %v398
      %v407 = vpack.c.b16 %v399, %v399
      %v408 = vpack.c.b16 %v400, %v400
      %v409 = vpack.c.b16 %v401, %v401
      %v410 = vpack.c.b16 %v402, %v402
      %419 = vst [vmem:[%s223] sm:$0xf] %v403
      %420 = vst [vmem:[%s223 + $0x4] sm:$0xf] %v404
      %421 = vst [vmem:[%s223 + $0x8] sm:$0xf] %v405
      %422 = vst [vmem:[%s223 + $0xc] sm:$0xf] %v406
      %423 = vst [vmem:[%s223 + $0x10] sm:$0xf] %v407
      %424 = vst [vmem:[%s223 + $0x14] sm:$0xf] %v408
      %425 = vst [vmem:[%s223 + $0x18] sm:$0xf] %v409
      %426 = vst [vmem:[%s223 + $0x1c] sm:$0xf] %v410
      %s427 = smul.u32 8, %s18
      %p428 = scmp.lt.s32.totalorder %s427, 15
      %s429 = scalar_select %p428, %s427, 15
      %p430 = scmp.lt.s32.totalorder %s19, 0
      %s431 = scalar_select %p430, %s19, 0
      %s432 = sadd.s32 %s431, %s429
      %s433 = smul.addr %s432, 4
      %s434 = scalar_lea.vmem %s3, %s433
      // Predicated region
      $region33: #{_focus_forward.1} parent=31 // pred_check
        %p435 = pneg %p124
      $region34: #{_focus_forward.1} parent=31 // pred_check_branch
        %437 = sbr.rel (%p435) target = $region36
      $region35: #{_focus_forward.1} parent=31 // pred_region
        %s438 = smul.u32 8, %s18
      $region36: #{_focus_forward.1} parent=31 // pred_fallthru
        _
    $region32: #{_focus_forward.1} parent=5 // pred_fallthru
      _
    %p439 = scmp.le.s32.totalorder 2, %s9
    // Predicated region
    $region37: #{_focus_forward.1} parent=5 // pred_check
      %p440 = pneg %p439
    $region38: #{_focus_forward.1} parent=5 // pred_check_branch
      %442 = sbr.rel (%p440) target = $region40
    $region39: #{_focus_forward.1} parent=5 // pred_region
      %s443 = ssub.s32 %s9, 2
      // Predicated region
      $region41: #{_focus_forward.1} parent=39 // pred_check
        %p444 = pneg %p130
      $region42: #{_focus_forward.1} parent=39 // pred_check_branch
        %446 = sbr.rel (%p444) target = $region44
      $region43: #{_focus_forward.1} parent=39 // pred_region
        %s447 = smul.u32 8, %s20
        %p448 = scmp.lt.s32.totalorder %s447, 15
        %s449 = scalar_select %p448, %s447, 15
        %p450 = scmp.lt.s32.totalorder %s21, 0
        %s451 = scalar_select %p450, %s21, 0
        %s452 = sadd.s32 %s451, %s449
        %s453 = smul.addr %s452, 4
        %s454 = scalar_lea.vmem %s3, %s453
      $region44: #{_focus_forward.1} parent=39 // pred_fallthru
        _
    $region40: #{_focus_forward.1} parent=5 // pred_fallthru
      _
  $region6: #{_focus_forward.1} parent=0 // loop_footer
    %s13 = sadd.s32 1, %s9
  $region7: #{_focus_forward.1} parent=0 // loop_footer_branch
    %8 = sbr.rel target = $region3
  $region8: #{_focus_forward.1} parent=0 // loop_exit
    _

</llo_original>
